<compile_context>
chip_gen: v5e
topology: v5e:2x2
jax: 0.10.0
libtpu: 0.0.40
codegen_flags: <defaults>
</compile_context>

<pallas_src>
import functools

import jax
import jax.numpy as jnp
from jax.experimental import pallas as pl
from jax.experimental.pallas import tpu as pltpu


def _round_up(v, m):
    return ((v + m - 1) // m) * m


def _cdiv(a, b):
    return (a + b - 1) // b


# ---------------------------------------------------------------------------
# Kernel
# ---------------------------------------------------------------------------
def _fused_decoder_kernel(x_ref, *refs, num_hidden, ab_pad, pi_pad):
    """Fused decoder: hidden Linear+ReLU chain, one concatenated 3-head matmul,
    softmax over the lane-aligned pi block.  Output is written as two unmasked,
    128-aligned stores (no in-kernel concatenate)."""
    out_ref = refs[-1]
    wrefs = refs[:-1]

    h = x_ref[...]
    # Statically unrolled hidden chain; each bias is added exactly once.
    for li in range(num_hidden):
        w = wrefs[2 * li][...]
        b = wrefs[2 * li + 1][...]
        h = jnp.dot(h, w, preferred_element_type=jnp.float32) + b
        h = jnp.maximum(h, 0.0)

    w_head = wrefs[2 * num_hidden][...]
    b_head = wrefs[2 * num_hidden + 1][...]
    heads = jnp.dot(h, w_head, preferred_element_type=jnp.float32) + b_head

    # alpha|beta block (padded columns carry zero weight/bias; sliced off by caller).
    out_ref[:, :ab_pad] = heads[:, :ab_pad].astype(out_ref.dtype)

    # pi block: softmax.  Padded columns carry bias -1e30 -> exp() == 0.
    logits = heads[:, ab_pad:ab_pad + pi_pad]
    m = jnp.max(logits, axis=-1, keepdims=True)
    e = jnp.exp(logits - m)
    denom = jnp.sum(e, axis=-1, keepdims=True)
    inv = pl.reciprocal(denom, approx=True)      # EUP slot, off the VALU
    inv = inv * (2.0 - denom * inv)              # one Newton step -> ~1e-7 rel err
    out_ref[:, ab_pad:] = (e * inv).astype(out_ref.dtype)


# ---------------------------------------------------------------------------
# Parameter construction / packing
# ---------------------------------------------------------------------------
def init_linear(key, in_dim, out_dim):
    """Deterministic init mimicking nn.Linear (uniform +-1/sqrt(in)).
    Weight stored transposed as (in, out) so kernels compute y = x @ W + b."""
    kw, kb = jax.random.split(key)
    bound = 1.0 / jnp.sqrt(jnp.float32(in_dim))
    w = jax.random.uniform(kw, (in_dim, out_dim), jnp.float32, -bound, bound)
    b = jax.random.uniform(kb, (1, out_dim), jnp.float32, -bound, bound)
    return w, b


def make_params(key, input_size, layers, latent):
    """Same layer stack as NetDecoderGammaMix.__init__."""
    dims = [latent] + layers[::-1]   # latent -> layers[-1] -> ... -> layers[0]
    keys = jax.random.split(key, len(dims) - 1 + 3)
    hidden = []
    for li in range(len(dims) - 1):
        hidden.append(init_linear(keys[li], dims[li], dims[li + 1]))
    alpha = init_linear(keys[-3], layers[0], input_size)
    beta = init_linear(keys[-2], layers[0], input_size)
    pi = init_linear(keys[-1], layers[0], input_size)
    return {"hidden": hidden, "alpha": alpha, "beta": beta, "pi": pi}


def prepare_fused_params(params, input_size):
    """Concatenate + lane-pad the three head layers into one (hid, ab_pad+pi_pad)
    weight.  alpha|beta pad columns: zero weight / zero bias (sliced off later).
    pi pad columns: zero weight / -1e30 bias so they vanish under softmax."""
    aw, abias = params["alpha"]
    bw, bbias = params["beta"]
    pw, pbias = params["pi"]

    ab_pad = _round_up(2 * input_size, 128)
    pi_pad = _round_up(input_size, 128)

    ab_w = jnp.concatenate([aw, bw], axis=1)
    ab_b = jnp.concatenate([abias, bbias], axis=1)
    ab_w = jnp.pad(ab_w, ((0, 0), (0, ab_pad - 2 * input_size)))
    ab_b = jnp.pad(ab_b, ((0, 0), (0, ab_pad - 2 * input_size)))

    pi_w = jnp.pad(pw, ((0, 0), (0, pi_pad - input_size)))
    pi_b = jnp.pad(pbias, ((0, 0), (0, pi_pad - input_size)),
                   constant_values=-1e30)

    return {
        "hidden": params["hidden"],
        "w_head": jnp.concatenate([ab_w, pi_w], axis=1),
        "b_head": jnp.concatenate([ab_b, pi_b], axis=1),
        "ab_pad": ab_pad,
        "pi_pad": pi_pad,
    }


# ---------------------------------------------------------------------------
# Tiling / specs
# ---------------------------------------------------------------------------
_MAX_TILE_B = 1024   # per-tile VMEM ~TILE_B*2.1 KB -> ~2.2 MiB at 1024; far under budget


def _choose_batch_tiling(B):
    """Pick (TILE_B, B_pad).

    Tiny batches: one tile, padded only to a multiple of 8 sublanes.
    Large batches: >=2 grid steps (lets the 'parallel' axis shard across v7x's
    two TensorCores), tile capped at 1024 rows (per-step overhead ~0.35us so
    bigger tiles amortize better), padding waste <= ~8 rows per step."""
    B8 = _round_up(max(B, 1), 8)
    if B8 <= 256:
        return B8, B8
    steps = max(2, _cdiv(B8, _MAX_TILE_B))
    tile = _round_up(_cdiv(B8, steps), 8)
    return tile, tile * steps


def _const_spec(shape):
    """Weights/biases are constant across the batch grid: single-buffer them.
    (Falls back to the default spec on jax versions without pipeline_mode.)"""
    try:
        return pl.BlockSpec(shape, lambda i: (0, 0),
                            pipeline_mode=pl.Buffered(buffer_count=1))
    except TypeError:
        return pl.BlockSpec(shape, lambda i: (0, 0))


# ---------------------------------------------------------------------------
# Forward wrapper
# ---------------------------------------------------------------------------
def net_decoder_gamma_mix_forward(fused, x, latent, input_size,
                                  out_dtype=jnp.float32, return_packed=False):
    x = x.reshape(-1, latent).astype(jnp.float32)
    B = x.shape[0]
    ab_pad = fused["ab_pad"]
    pi_pad = fused["pi_pad"]
    out_w = ab_pad + pi_pad

    TILE_B, B_pad = _choose_batch_tiling(B)
    if B_pad != B:
        x = jnp.pad(x, ((0, B_pad - B), (0, 0)))

    num_hidden = len(fused["hidden"])
    kernel = functools.partial(
        _fused_decoder_kernel,
        num_hidden=num_hidden, ab_pad=ab_pad, pi_pad=pi_pad)

    weight_args = []
    in_specs = [pl.BlockSpec((TILE_B, latent), lambda i: (i, 0))]
    for (w, b) in fused["hidden"]:
        weight_args += [w, b]
        in_specs += [_const_spec(w.shape), _const_spec(b.shape)]
    weight_args += [fused["w_head"], fused["b_head"]]
    in_specs += [_const_spec(fused["w_head"].shape),
                 _const_spec(fused["b_head"].shape)]
    # TODO(synk): if input_size grows so w_head reaches tens of MB, add an
    # N-tiling grid axis over the head columns (or raise vmem_limit_bytes) so a
    # single-pass fused decoder still fits v7x's 64 MiB VMEM.

    out = pl.pallas_call(
        kernel,
        out_shape=jax.ShapeDtypeStruct((B_pad, out_w), out_dtype),
        grid=(B_pad // TILE_B,),
        in_specs=in_specs,
        out_specs=pl.BlockSpec((TILE_B, out_w), lambda i: (i, 0)),
        compiler_params=pltpu.CompilerParams(
            dimension_semantics=("parallel",)),
    )(x, *weight_args)

    if return_packed:
        # Lane-dense slab: alpha = [:, :input_size], beta = [:, input_size:2*input_size],
        # pi = [:, ab_pad:ab_pad+input_size].  Lets consumers slice lazily instead
        # of re-reading the slab from HBM here.
        return out, B

    alpha = out[:B, 0:input_size]
    beta = out[:B, input_size:2 * input_size]
    pi = out[:B, ab_pad:ab_pad + input_size]
    return alpha, beta, pi


# ---------------------------------------------------------------------------
# Pure-JAX reference + test
# ---------------------------------------------------------------------------
def reference_forward(params, x, latent):
    x = x.reshape(-1, latent).astype(jnp.float32)
    for (w, b) in params["hidden"]:
        x = jnp.maximum(x @ w + b, 0.0)
    alpha = x @ params["alpha"][0] + params["alpha"][1]
    beta = x @ params["beta"][0] + params["beta"][1]
    logits = x @ params["pi"][0] + params["pi"][1]
    pi = jax.nn.softmax(logits, axis=-1)
    return alpha, beta, pi


if __name__ == "__main__":
    # Small synthetic shapes consistent with the module.
    input_size = 64
    layers = [32, 16]   # layers[0]=32 (last hidden width), layers[-1]=16 (first hidden)
    latent = 8
    batch = 8

    key = jax.random.PRNGKey(0)
    kp, kx, kx2 = jax.random.split(key, 3)
    params = make_params(kp, input_size, layers, latent)
    fused = prepare_fused_params(params, input_size)

    # --- Small-batch / single-tile path; arbitrary-shaped input like x.view(-1, latent).
    x = jax.random.normal(kx, (2, 4, latent), jnp.float32)
    alpha, beta, pi = net_decoder_gamma_mix_forward(fused, x, latent, input_size)
    jax.block_until_ready((alpha, beta, pi))

    ra, rb, rp = reference_forward(params, x, latent)
    assert alpha.shape == (batch, input_size)
    assert beta.shape == (batch, input_size)
    assert pi.shape == (batch, input_size)
    assert jnp.allclose(alpha, ra, atol=1e-5, rtol=1e-5)
    assert jnp.allclose(beta, rb, atol=1e-5, rtol=1e-5)
    assert jnp.allclose(pi, rp, atol=1e-5, rtol=1e-5)
    assert jnp.allclose(jnp.sum(pi, axis=-1), 1.0, atol=1e-5)

    # --- Multi-tile path: exercises >=2 grid steps + adaptive padding.
    x2 = jax.random.normal(kx2, (272, latent), jnp.float32)
    a2, b2, p2 = net_decoder_gamma_mix_forward(fused, x2, latent, input_size)
    jax.block_until_ready((a2, b2, p2))
    ra2, rb2, rp2 = reference_forward(params, x2, latent)
    assert a2.shape == (272, input_size)
    assert jnp.allclose(a2, ra2, atol=1e-5, rtol=1e-5)
    assert jnp.allclose(b2, rb2, atol=1e-5, rtol=1e-5)
    assert jnp.allclose(p2, rp2, atol=1e-5, rtol=1e-5)
    assert jnp.allclose(jnp.sum(p2, axis=-1), 1.0, atol=1e-5)

    print("KERNEL_OK")
</pallas_src>

<mosaic_0001>
module attributes {stable_mosaic.version = 11 : i64} {
  func.func @_fused_decoder_kernel(%arg0: i32, %arg1: memref<8x8xf32, #tpu.memory_space<vmem>>, %arg2: memref<8x16xf32, #tpu.memory_space<vmem>>, %arg3: memref<1x16xf32, #tpu.memory_space<vmem>>, %arg4: memref<16x32xf32, #tpu.memory_space<vmem>>, %arg5: memref<1x32xf32, #tpu.memory_space<vmem>>, %arg6: memref<32x256xf32, #tpu.memory_space<vmem>>, %arg7: memref<1x256xf32, #tpu.memory_space<vmem>>, %arg8: memref<8x256xf32, #tpu.memory_space<vmem>>) attributes {dimension_semantics = [#tpu.dimension_semantics<parallel>], iteration_bounds = array<i64: 1>, scalar_prefetch = 0 : i64, scratch_operands = 0 : i64, tpu.core_type = #tpu.core_type<tc>, window_params = [{transform_indices = @transform_0, window_bounds = array<i64: 8, 8>}, {pipeline_mode = #tpu.pipeline_mode<synchronous>, transform_indices = @transform_1, window_bounds = array<i64: 8, 16>}, {pipeline_mode = #tpu.pipeline_mode<synchronous>, transform_indices = @transform_2, window_bounds = array<i64: 1, 16>}, {pipeline_mode = #tpu.pipeline_mode<synchronous>, transform_indices = @transform_3, window_bounds = array<i64: 16, 32>}, {pipeline_mode = #tpu.pipeline_mode<synchronous>, transform_indices = @transform_4, window_bounds = array<i64: 1, 32>}, {pipeline_mode = #tpu.pipeline_mode<synchronous>, transform_indices = @transform_5, window_bounds = array<i64: 32, 256>}, {pipeline_mode = #tpu.pipeline_mode<synchronous>, transform_indices = @transform_6, window_bounds = array<i64: 1, 256>}, {transform_indices = @transform_7, window_bounds = array<i64: 8, 256>}]} {
    %c0 = arith.constant 0 : index
    %c0_0 = arith.constant 0 : index
    %0 = vector.load %arg1[%c0, %c0_0] : memref<8x8xf32, #tpu.memory_space<vmem>>, vector<8x8xf32>
    %c0_1 = arith.constant 0 : index
    %c0_2 = arith.constant 0 : index
    %1 = vector.load %arg2[%c0_1, %c0_2] : memref<8x16xf32, #tpu.memory_space<vmem>>, vector<8x16xf32>
    %c0_3 = arith.constant 0 : index
    %c0_4 = arith.constant 0 : index
    %2 = vector.load %arg3[%c0_3, %c0_4] : memref<1x16xf32, #tpu.memory_space<vmem>>, vector<1x16xf32>
    %cst = arith.constant dense<0.000000e+00> : vector<8x16xf32>
    %3 = tpu.matmul %0, %1, %cst {dimension_numbers = #tpu.dot_dimension_numbers<[1], [0], [0], [1], [0, 0, 1, 1], [], []>} : vector<8x8xf32>, vector<8x16xf32>, vector<8x16xf32> -> vector<8x16xf32>
    %4 = vector.broadcast %2 : vector<1x16xf32> to vector<8x16xf32>
    %5 = arith.addf %3, %4 : vector<8x16xf32>
    %cst_5 = arith.constant 0.000000e+00 : f32
    %6 = vector.broadcast %cst_5 : f32 to vector<8x16xf32>
    %7 = arith.maximumf %5, %6 : vector<8x16xf32>
    %c0_6 = arith.constant 0 : index
    %c0_7 = arith.constant 0 : index
    %8 = vector.load %arg4[%c0_6, %c0_7] : memref<16x32xf32, #tpu.memory_space<vmem>>, vector<16x32xf32>
    %c0_8 = arith.constant 0 : index
    %c0_9 = arith.constant 0 : index
    %9 = vector.load %arg5[%c0_8, %c0_9] : memref<1x32xf32, #tpu.memory_space<vmem>>, vector<1x32xf32>
    %cst_10 = arith.constant dense<0.000000e+00> : vector<8x32xf32>
    %10 = tpu.matmul %7, %8, %cst_10 {dimension_numbers = #tpu.dot_dimension_numbers<[1], [0], [0], [1], [0, 0, 1, 1], [], []>} : vector<8x16xf32>, vector<16x32xf32>, vector<8x32xf32> -> vector<8x32xf32>
    %11 = vector.broadcast %9 : vector<1x32xf32> to vector<8x32xf32>
    %12 = arith.addf %10, %11 : vector<8x32xf32>
    %cst_11 = arith.constant 0.000000e+00 : f32
    %13 = vector.broadcast %cst_11 : f32 to vector<8x32xf32>
    %14 = arith.maximumf %12, %13 : vector<8x32xf32>
    %c0_12 = arith.constant 0 : index
    %c0_13 = arith.constant 0 : index
    %15 = vector.load %arg6[%c0_12, %c0_13] : memref<32x256xf32, #tpu.memory_space<vmem>>, vector<32x256xf32>
    %c0_14 = arith.constant 0 : index
    %c0_15 = arith.constant 0 : index
    %16 = vector.load %arg7[%c0_14, %c0_15] : memref<1x256xf32, #tpu.memory_space<vmem>>, vector<1x256xf32>
    %cst_16 = arith.constant dense<0.000000e+00> : vector<8x256xf32>
    %17 = tpu.matmul %14, %15, %cst_16 {dimension_numbers = #tpu.dot_dimension_numbers<[1], [0], [0], [1], [0, 0, 1, 1], [], []>} : vector<8x32xf32>, vector<32x256xf32>, vector<8x256xf32> -> vector<8x256xf32>
    %18 = vector.broadcast %16 : vector<1x256xf32> to vector<8x256xf32>
    %19 = arith.addf %17, %18 : vector<8x256xf32>
    %20 = vector.extract_strided_slice %19 {offsets = [0, 0], sizes = [8, 128], strides = [1, 1]} : vector<8x256xf32> to vector<8x128xf32>
    %c0_17 = arith.constant 0 : index
    %c0_18 = arith.constant 0 : index
    %21 = vector.load %arg8[%c0_17, %c0_18] : memref<8x256xf32, #tpu.memory_space<vmem>>, vector<8x128xf32>
    tpu.vector_store %arg8[%c0_17, %c0_18], %20 {strides = array<i32>} : memref<8x256xf32, #tpu.memory_space<vmem>>, vector<8x128xf32>,
    %22 = vector.extract_strided_slice %19 {offsets = [0, 128], sizes = [8, 128], strides = [1, 1]} : vector<8x256xf32> to vector<8x128xf32>
    %cst_19 = arith.constant dense<0xFF800000> : vector<8xf32>
    %23 = vector.multi_reduction <maximumf>, %22, %cst_19 [1] : vector<8x128xf32> to vector<8xf32>
    %24 = vector.shape_cast %23 : vector<8xf32> to vector<8x1xf32>
    %25 = vector.broadcast %24 : vector<8x1xf32> to vector<8x128xf32>
    %26 = arith.subf %22, %25 : vector<8x128xf32>
    %27 = math.exp %26 : vector<8x128xf32>
    %cst_20 = arith.constant dense<0.000000e+00> : vector<8xf32>
    %28 = vector.multi_reduction <add>, %27, %cst_20 [1] : vector<8x128xf32> to vector<8xf32>
    %29 = vector.shape_cast %28 : vector<8xf32> to vector<8x1xf32>
    %30 = tpu.reciprocal %29 {approx = true} : vector<8x1xf32> -> vector<8x1xf32>
    %31 = arith.mulf %29, %30 : vector<8x1xf32>
    %cst_21 = arith.constant 2.000000e+00 : f32
    %32 = vector.broadcast %cst_21 : f32 to vector<8x1xf32>
    %33 = arith.subf %32, %31 : vector<8x1xf32>
    %34 = arith.mulf %30, %33 : vector<8x1xf32>
    %35 = vector.broadcast %34 : vector<8x1xf32> to vector<8x128xf32>
    %36 = arith.mulf %27, %35 : vector<8x128xf32>
    %c0_22 = arith.constant 0 : index
    %c128 = arith.constant 128 : index
    %37 = vector.load %arg8[%c0_22, %c128] : memref<8x256xf32, #tpu.memory_space<vmem>>, vector<8x128xf32>
    tpu.vector_store %arg8[%c0_22, %c128], %36 {strides = array<i32>} : memref<8x256xf32, #tpu.memory_space<vmem>>, vector<8x128xf32>,
    return
  }
  func.func @transform_0(%arg0: i32) -> (i32, i32) {
    %c0_i32 = arith.constant 0 : i32
    %c0_i32_0 = arith.constant 0 : i32
    return %arg0, %c0_i32 : i32, i32
  }
  func.func @transform_1(%arg0: i32) -> (i32, i32) {
    %c0_i32 = arith.constant 0 : i32
    %c0_i32_0 = arith.constant 0 : i32
    %c0_i32_1 = arith.constant 0 : i32
    return %c0_i32, %c0_i32_0 : i32, i32
  }
  func.func @transform_2(%arg0: i32) -> (i32, i32) {
    %c0_i32 = arith.constant 0 : i32
    %c0_i32_0 = arith.constant 0 : i32
    %c0_i32_1 = arith.constant 0 : i32
    return %c0_i32, %c0_i32_0 : i32, i32
  }
  func.func @transform_3(%arg0: i32) -> (i32, i32) {
    %c0_i32 = arith.constant 0 : i32
    %c0_i32_0 = arith.constant 0 : i32
    %c0_i32_1 = arith.constant 0 : i32
    return %c0_i32, %c0_i32_0 : i32, i32
  }
  func.func @transform_4(%arg0: i32) -> (i32, i32) {
    %c0_i32 = arith.constant 0 : i32
    %c0_i32_0 = arith.constant 0 : i32
    %c0_i32_1 = arith.constant 0 : i32
    return %c0_i32, %c0_i32_0 : i32, i32
  }
  func.func @transform_5(%arg0: i32) -> (i32, i32) {
    %c0_i32 = arith.constant 0 : i32
    %c0_i32_0 = arith.constant 0 : i32
    %c0_i32_1 = arith.constant 0 : i32
    return %c0_i32, %c0_i32_0 : i32, i32
  }
  func.func @transform_6(%arg0: i32) -> (i32, i32) {
    %c0_i32 = arith.constant 0 : i32
    %c0_i32_0 = arith.constant 0 : i32
    %c0_i32_1 = arith.constant 0 : i32
    return %c0_i32, %c0_i32_0 : i32, i32
  }
  func.func @transform_7(%arg0: i32) -> (i32, i32) {
    %c0_i32 = arith.constant 0 : i32
    %c0_i32_0 = arith.constant 0 : i32
    return %arg0, %c0_i32 : i32, i32
  }
}

</mosaic_0001>

<llo_original>
// kernel: tpu_custom_call.1
$region0: #{tpu_custom_call.1}
  #allocation0 [shape = 'u32[]', space=smem, size = 0x4, offset = 0x4, fixed_abs, tag = 'smem constant byte address 0x4 - core index']
  #allocation1 [shape = 'u32[72,128]{1,0:T(1,128)}', space=vmem, size = 0x9000, scoped, tag = 'internal scratch']
  %s0 = inlined_call_operand.hbm [shape: f32[8,8], index: 0, kind: input, shape index: {}]
  %s1 = inlined_call_operand.hbm [shape: f32[8,16], index: 1, kind: input, shape index: {}]
  %s2 = inlined_call_operand.vmem [shape: f32[1,16], index: 2, kind: input, shape index: {}]
  %s3 = inlined_call_operand.hbm [shape: f32[16,32], index: 3, kind: input, shape index: {}]
  %s4 = inlined_call_operand.hbm [shape: f32[1,32], index: 4, kind: input, shape index: {}]
  %s5 = inlined_call_operand.hbm [shape: f32[32,256], index: 5, kind: input, shape index: {}]
  %s6 = inlined_call_operand.vmem [shape: f32[1,256], index: 6, kind: input, shape index: {}]
  %s7 = inlined_call_operand.hbm [shape: f32[8,256], index: 7, kind: output, shape index: {}]
  %s8 = sld [smem:[#allocation0]]
  $region58: #{tpu_custom_call.1} parent=0
    _
  %s10 = ssub.s32 1, %s8
  %s11 = scalar_select 0, %s10, %s8
  $region1: #{tpu_custom_call.1} parent=0
    #allocation2 [shape = 'u8[4096]{0}', space=vmem, size = 0x1000, scoped, tag = 'input window, operand 0, single buffered']
    #allocation3 [shape = 's32[1]{0}', space=sflag, size = 0x4, scoped, tag = 'scoped memory for tpu_custom_call.1']
    #allocation4 [shape = 's32[1]{0}', space=sflag, size = 0x4, scoped, tag = 'scoped memory for tpu_custom_call.1']
    #allocation5 [shape = 'u8[4096]{0}', space=vmem, size = 0x1000, scoped, tag = 'input window, operand 1, single buffered']
    #allocation6 [shape = 's32[1]{0}', space=sflag, size = 0x4, scoped, tag = 'scoped memory for tpu_custom_call.1']
    #allocation7 [shape = 'u8[8192]{0}', space=vmem, size = 0x2000, scoped, tag = 'input window, operand 3, single buffered']
    #allocation8 [shape = 'u8[512]{0}', space=vmem, size = 0x400, scoped, tag = 'input window, operand 4, single buffered']
    #allocation9 [shape = 's32[1]{0}', space=sflag, size = 0x4, scoped, tag = 'scoped memory for tpu_custom_call.1']
    #allocation10 [shape = 'u8[32768]{0}', space=vmem, size = 0x8000, scoped, tag = 'input window, operand 5, single buffered']
    #allocation11 [shape = 'u8[8192]{0}', space=vmem, size = 0x2000, scoped, tag = 'output window, operand 0, single buffered']
    %12 = vsyncpa [#allocation3], 0
    %13 = vsyncpa [#allocation6], 0
    %14 = vsyncpa [#allocation9], 0
    %15 = vsyncpa [#allocation4], 0
    // Predicated region
    $region2: #{tpu_custom_call.1} parent=1 // pred_check
      _
    $region3: #{tpu_custom_call.1} parent=1 // pred_check_branch
      %17 = sbr.rel (0) target = $region5
    $region4: #{tpu_custom_call.1} parent=1 // pred_region
      %19 = vsyncadd [#allocation3], 0
      %s21 = sshll.u32 %s0, 4
      %s22 = int_to_ptr.hbm [resolvable:$true] %s21
      %s23 = sshll.u32 [#allocation2], 4
      %s24 = int_to_ptr.vmem [resolvable:$true] %s23
      %26 = dma.hbm_to_vmem [thread:$0]  %s22, 128, %s24, [#allocation3]
    $region5: #{tpu_custom_call.1} parent=1 // pred_fallthru
      _
    // Predicated region
    $region6: #{tpu_custom_call.1} parent=1 // pred_check
      _
    $region7: #{tpu_custom_call.1} parent=1 // pred_check_branch
      %28 = sbr.rel (0) target = $region9
    $region8: #{tpu_custom_call.1} parent=1 // pred_region
      %30 = vsyncadd [#allocation6], 0
      %s32 = sshll.u32 %s1, 4
      %s33 = int_to_ptr.hbm [resolvable:$true] %s32
      %s34 = sshll.u32 [#allocation5], 4
      %s35 = int_to_ptr.vmem [resolvable:$true] %s34
      %37 = dma.hbm_to_vmem [thread:$0]  %s33, 128, %s35, [#allocation6]
    $region9: #{tpu_custom_call.1} parent=1 // pred_fallthru
      _
    // Predicated region
    $region10: #{tpu_custom_call.1} parent=1 // pred_check
      _
    $region11: #{tpu_custom_call.1} parent=1 // pred_check_branch
      %39 = sbr.rel (0) target = $region13
    $region12: #{tpu_custom_call.1} parent=1 // pred_region
      _
    $region13: #{tpu_custom_call.1} parent=1 // pred_fallthru
      _
    // Predicated region
    $region14: #{tpu_custom_call.1} parent=1 // pred_check
      _
    $region15: #{tpu_custom_call.1} parent=1 // pred_check_branch
      %41 = sbr.rel (0) target = $region17
    $region16: #{tpu_custom_call.1} parent=1 // pred_region
      %43 = vsyncadd [#allocation6], 0
      %s44 = sshll.u32 %s3, 4
      %s45 = int_to_ptr.hbm [resolvable:$true] %s44
      %s46 = sshll.u32 [#allocation7], 4
      %s47 = int_to_ptr.vmem [resolvable:$true] %s46
      %52 = dma.hbm_to_vmem [thread:$0]  %s45, 256, %s47, [#allocation6], 128, 128, 8
    $region17: #{tpu_custom_call.1} parent=1 // pred_fallthru
      _
    // Predicated region
    $region18: #{tpu_custom_call.1} parent=1 // pred_check
      _
    $region19: #{tpu_custom_call.1} parent=1 // pred_check_branch
      %54 = sbr.rel (0) target = $region21
    $region20: #{tpu_custom_call.1} parent=1 // pred_region
      %56 = vsyncadd [#allocation9], 0
      %s58 = sshll.u32 %s4, 4
      %s59 = int_to_ptr.hbm [resolvable:$true] %s58
      %s60 = sshll.u32 [#allocation8], 4
      %s61 = int_to_ptr.vmem [resolvable:$true] %s60
      %63 = dma.hbm_to_vmem [thread:$0]  %s59, 16, %s61, [#allocation9]
    $region21: #{tpu_custom_call.1} parent=1 // pred_fallthru
      _
    // Predicated region
    $region22: #{tpu_custom_call.1} parent=1 // pred_check
      _
    $region23: #{tpu_custom_call.1} parent=1 // pred_check_branch
      %65 = sbr.rel (0) target = $region25
    $region24: #{tpu_custom_call.1} parent=1 // pred_region
      %67 = vsyncadd [#allocation9], 0
      %s68 = sshll.u32 %s5, 4
      %s69 = int_to_ptr.hbm [resolvable:$true] %s68
      %s70 = sshll.u32 [#allocation10], 4
      %s71 = int_to_ptr.vmem [resolvable:$true] %s70
      %76 = dma.hbm_to_vmem [thread:$0]  %s69, 1024, %s71, [#allocation9], 256, 256, 16
    $region25: #{tpu_custom_call.1} parent=1 // pred_fallthru
      _
    // Predicated region
    $region26: #{tpu_custom_call.1} parent=1 // pred_check
      _
    $region27: #{tpu_custom_call.1} parent=1 // pred_check_branch
      %78 = sbr.rel (0) target = $region29
    $region28: #{tpu_custom_call.1} parent=1 // pred_region
      _
    $region29: #{tpu_custom_call.1} parent=1 // pred_fallthru
      _
    // Predicated region
    $region30: #{tpu_custom_call.1} parent=1 // pred_check
      _
    $region31: #{tpu_custom_call.1} parent=1 // pred_check_branch
      %80 = sbr.rel (0) target = $region33
    $region32: #{tpu_custom_call.1} parent=1 // pred_region
      %82 = dma.done [#allocation3], 128
    $region33: #{tpu_custom_call.1} parent=1 // pred_fallthru
      _
    // Predicated region
    $region34: #{tpu_custom_call.1} parent=1 // pred_check
      _
    $region35: #{tpu_custom_call.1} parent=1 // pred_check_branch
      %84 = sbr.rel (0) target = $region37
    $region36: #{tpu_custom_call.1} parent=1 // pred_region
      %86 = dma.done [#allocation6], 128
    $region37: #{tpu_custom_call.1} parent=1 // pred_fallthru
      _
    // Predicated region
    $region38: #{tpu_custom_call.1} parent=1 // pred_check
      _
    $region39: #{tpu_custom_call.1} parent=1 // pred_check_branch
      %88 = sbr.rel (0) target = $region41
    $region40: #{tpu_custom_call.1} parent=1 // pred_region
      %90 = dma.done [#allocation6], 256
    $region41: #{tpu_custom_call.1} parent=1 // pred_fallthru
      _
    // Predicated region
    $region42: #{tpu_custom_call.1} parent=1 // pred_check
      _
    $region43: #{tpu_custom_call.1} parent=1 // pred_check_branch
      %92 = sbr.rel (0) target = $region45
    $region44: #{tpu_custom_call.1} parent=1 // pred_region
      %94 = dma.done [#allocation9], 16
    $region45: #{tpu_custom_call.1} parent=1 // pred_fallthru
      _
    // Predicated region
    $region46: #{tpu_custom_call.1} parent=1 // pred_check
      _
    $region47: #{tpu_custom_call.1} parent=1 // pred_check_branch
      %96 = sbr.rel (0) target = $region49
    $region48: #{tpu_custom_call.1} parent=1 // pred_region
      %98 = dma.done [#allocation9], 1024
    $region49: #{tpu_custom_call.1} parent=1 // pred_fallthru
      _
    %v99 = vld [vmem:[#allocation2] sm:$0xff]
    %v100 = vld [vmem:[#allocation5] sm:$0xff]
    %v101 = vld [vmem:[%s2] sm:$0x1]
    %v103 = vperm.slane %v101, 0
    %vm105 = vcmask 64512
    %v107 = vsel %vm105, %v99, 0
    %109 = vmatpush.msra.mxu0 0.0
    %110 = vmatpush.msra.mxu0 0.0
    %111 = vmatpush.msra.mxu0 0.0
    %112 = vmatpush.msra.mxu0 0.0
    %113 = vmatpush.msra.mxu0 0.0
    %114 = vmatpush.msra.mxu0 0.0
    %115 = vmatpush.msra.mxu0 0.0
    %116 = vmatpush.msra.mxu0 0.0
    %117 = vmatpush.msra.mxu0 0.0
    %118 = vmatpush.msra.mxu0 0.0
    %119 = vmatpush.msra.mxu0 0.0
    %120 = vmatpush.msra.mxu0 0.0
    %121 = vmatpush.msra.mxu0 0.0
    %122 = vmatpush.msra.mxu0 0.0
    %123 = vmatpush.msra.mxu0 0.0
    %124 = vmatpush.msra.mxu0 %v100
    %125 = vmatmul.f32.gmra.mxu0 %v107
    %v126 = vpop.f32.mrf.mxu0
    %v127 = vadd.f32 %v103, %v126
    %128 = vdwg.mxu0
    %v129 = vmax.f32 %v127, 0.0
    %v130 = vld [vmem:[#allocation7] sm:$0xff]
    %v131 = vld [vmem:[#allocation7 + $0x8] sm:$0xff]
    %v132 = vld [vmem:[#allocation8] sm:$0x1]
    %v134 = vperm.slane %v132, 0
    %vm136 = vcmask 130048
    %v138 = vsel %vm136, %v129, 0
    %140 = vmatpush.msra.mxu0 0.0
    %141 = vmatpush.msra.mxu0 0.0
    %142 = vmatpush.msra.mxu0 0.0
    %143 = vmatpush.msra.mxu0 0.0
    %144 = vmatpush.msra.mxu0 0.0
    %145 = vmatpush.msra.mxu0 0.0
    %146 = vmatpush.msra.mxu0 0.0
    %147 = vmatpush.msra.mxu0 0.0
    %148 = vmatpush.msra.mxu0 0.0
    %149 = vmatpush.msra.mxu0 0.0
    %150 = vmatpush.msra.mxu0 0.0
    %151 = vmatpush.msra.mxu0 0.0
    %152 = vmatpush.msra.mxu0 0.0
    %153 = vmatpush.msra.mxu0 0.0
    %154 = vmatpush.msra.mxu0 %v131
    %155 = vmatpush.msra.mxu0 %v130
    %156 = vmatmul.f32.gmra.mxu0 %v138
    %v157 = vpop.f32.mrf.mxu0
    %v158 = vadd.f32 %v134, %v157
    %159 = vdwg.mxu0
    %v160 = vmax.f32 %v158, 0.0
    %v161 = vld [vmem:[#allocation10] sm:$0xff]
    %v162 = vld [vmem:[#allocation10 + $0x8] sm:$0xff]
    %v163 = vld [vmem:[#allocation10 + $0x10] sm:$0xff]
    %v164 = vld [vmem:[#allocation10 + $0x18] sm:$0xff]
    %v165 = vld [vmem:[#allocation10 + $0x20] sm:$0xff]
    %v166 = vld [vmem:[#allocation10 + $0x28] sm:$0xff]
    %v167 = vld [vmem:[#allocation10 + $0x30] sm:$0xff]
    %v168 = vld [vmem:[#allocation10 + $0x38] sm:$0xff]
    %v169 = vld [vmem:[%s6] sm:$0x3]
    %v171 = vperm.slane %v169, 0
    %v172 = vperm.slane %v169, 1
    %vm175 = vcmask 261120
    %v177 = vsel %vm175, %v160, 0
    %179 = vmatpush.msra.mxu0 0.0
    %180 = vmatpush.msra.mxu0 0.0
    %181 = vmatpush.msra.mxu0 0.0
    %182 = vmatpush.msra.mxu0 0.0
    %183 = vmatpush.msra.mxu0 0.0
    %184 = vmatpush.msra.mxu0 0.0
    %185 = vmatpush.msra.mxu0 0.0
    %186 = vmatpush.msra.mxu0 0.0
    %187 = vmatpush.msra.mxu0 0.0
    %188 = vmatpush.msra.mxu0 0.0
    %189 = vmatpush.msra.mxu0 0.0
    %190 = vmatpush.msra.mxu0 0.0
    %191 = vmatpush.msra.mxu0 %v167
    %192 = vmatpush.msra.mxu0 %v165
    %193 = vmatpush.msra.mxu0 %v163
    %194 = vmatpush.msra.mxu0 %v161
    %195 = vmatmul.f32.gmra.mxu0 %v177
    %v196 = vpop.f32.mrf.mxu0
    %v197 = vadd.f32 %v171, %v196
    %198 = vdwg.mxu0
    %199 = vmatpush.msra.mxu0 0.0
    %200 = vmatpush.msra.mxu0 0.0
    %201 = vmatpush.msra.mxu0 0.0
    %202 = vmatpush.msra.mxu0 0.0
    %203 = vmatpush.msra.mxu0 0.0
    %204 = vmatpush.msra.mxu0 0.0
    %205 = vmatpush.msra.mxu0 0.0
    %206 = vmatpush.msra.mxu0 0.0
    %207 = vmatpush.msra.mxu0 0.0
    %208 = vmatpush.msra.mxu0 0.0
    %209 = vmatpush.msra.mxu0 0.0
    %210 = vmatpush.msra.mxu0 0.0
    %211 = vmatpush.msra.mxu0 %v168
    %212 = vmatpush.msra.mxu0 %v166
    %213 = vmatpush.msra.mxu0 %v164
    %214 = vmatpush.msra.mxu0 %v162
    %215 = vmatmul.f32.gmra.mxu0 %v177
    %v216 = vpop.f32.mrf.mxu0
    %v217 = vadd.f32 %v172, %v216
    %218 = vdwg.mxu0
    %219 = vst [vmem:[#allocation11] sm:$0xff] %v197
    %220 = vmax.xlane.f32.xlu0 %v217
    %v221 = vpop.xlane.xlu0 %220
    %v222 = vsub.f32 %v217, %v221
    %v223 = vmul.f32 %v222, 1.442695
    %v224 = vpow.pop %v223
    %225 = vadd.xlane.f32.xlu0 %v224
    %v226 = vpop.xlane.xlu0 %225
    %v227 = vrcp.pop %v226
    %v228 = vmul.f32 %v226, %v227
    %v229 = vsub.f32 2.0, %v228
    %v230 = vmul.f32 %v227, %v229
    %v231 = vmul.f32 %v224, %v230
    %232 = vst [vmem:[#allocation11 + $0x8] sm:$0xff] %v231
    // Predicated region
    $region50: #{tpu_custom_call.1} parent=1 // pred_check
      _
    $region51: #{tpu_custom_call.1} parent=1 // pred_check_branch
      %234 = sbr.rel (0) target = $region53
    $region52: #{tpu_custom_call.1} parent=1 // pred_region
      %236 = vsyncadd [#allocation4], 0
      %s238 = sshll.u32 [#allocation11], 4
      %s239 = int_to_ptr.vmem [resolvable:$true] %s238
      %s240 = sshll.u32 %s7, 4
      %s241 = int_to_ptr.hbm [resolvable:$true] %s240
      %243 = dma.vmem_to_hbm [thread:$0]  %s239, 256, %s241, [#allocation4]
    $region53: #{tpu_custom_call.1} parent=1 // pred_fallthru
      _
    // Predicated region
    $region54: #{tpu_custom_call.1} parent=1 // pred_check
      _
    $region55: #{tpu_custom_call.1} parent=1 // pred_check_branch
      %245 = sbr.rel (0) target = $region57
    $region56: #{tpu_custom_call.1} parent=1 // pred_region
      %247 = dma.done [#allocation4], 256
    $region57: #{tpu_custom_call.1} parent=1 // pred_fallthru
      _
    %248 = vsyncpa [#allocation3], 1
    %249 = vsyncpa [#allocation6], 1
    %250 = vsyncpa [#allocation9], 1
    %251 = vsyncpa [#allocation4], 1

</llo_original>
